<compile_context>
chip_gen: v5e
topology: v5e:2x2
jax: 0.10.0
libtpu: 0.0.40
codegen_flags: <defaults>
</compile_context>

<pallas_src>
import functools

import jax
import jax.numpy as jnp
from jax import lax
from jax.experimental import pallas as pl
from jax.experimental.pallas import tpu as pltpu


def _round_up(a: int, b: int) -> int:
    return ((a + b - 1) // b) * b


def _wh_kernel(L1, L2, C, n_chunks, unroll,
               h1_ref, h2_ref, poly_ref, x_ref, halo_ref, out_ref):
    """One grid step = one (r_blk, C) output block of the folded signal.

    h1_ref:   SMEM (L1,)        FIR-1 taps
    h2_ref:   SMEM (L2,)        FIR-2 taps
    poly_ref: SMEM (4,)         polynomial coefficients a0..a3
    x_ref:    VMEM (r_blk, C)   main overlap-save rows
    halo_ref: VMEM (r_blk, Hh)  per-row halo (head of the next row)
    out_ref:  VMEM (r_blk, C)   output rows
    """
    W1 = C + L2 - 1                      # intermediate width needed by FIR-2

    # Hoist every SMEM scalar read out of the chunk loop.
    h1 = [h1_ref[k] for k in range(L1)]
    h2 = [h2_ref[j] for j in range(L2)]
    a0, a1, a2, a3 = (poly_ref[i] for i in range(4))

    def chunk(c, carry):
        r0 = pl.multiple_of(c * 8, 8)

        # One in-register row window: main columns + halo of the next row.
        xm = x_ref[pl.ds(r0, 8), :]                  # (8, C)
        xh = halo_ref[pl.ds(r0, 8), :]               # (8, Hh)
        xw = jnp.concatenate([xm, xh], axis=1)       # (8, C + Hh), stays in vregs

        # FIR-1 (cross-correlation, identical semantics to F.conv1d): static
        # lane-shifted slices of the vreg-resident window -> XLU, not vld slots.
        y1 = h1[0] * xw[:, 0:W1]
        for k in range(1, L1):
            y1 = y1 + h1[k] * xw[:, k:k + W1]

        # 3rd-order polynomial nonlinearity (Horner form).
        z = ((a3 * y1 + a2) * y1 + a1) * y1 + a0

        # FIR-2 directly on the vreg-resident intermediate (no VMEM scratch).
        acc = h2[0] * z[:, 0:C]
        for j in range(1, L2):
            acc = acc + h2[j] * z[:, j:j + C]

        out_ref[pl.ds(r0, 8), :] = acc
        return carry

    lax.fori_loop(0, n_chunks, chunk, 0, unroll=unroll)


def _fix_boundaries(out, x, h1, h2, poly, N, N1, N2, P1, P2, L1, L2):
    """Recompute the first/last P2 output samples exactly (FIR-2 zero-pad semantics)."""
    def z_at(idx):                                   # z[i] for a small static index set
        xi = idx[:, None] + jnp.arange(L1)[None, :] - P1
        xv = jnp.where((xi >= 0) & (xi < N), x[jnp.clip(xi, 0, N - 1)], 0.0)
        y1 = xv @ h1
        return ((poly[3] * y1 + poly[2]) * y1 + poly[1]) * y1 + poly[0]

    j = jnp.arange(L2)[None, :]
    nz = L2 - 1                                      # P2 > 0 implies L2 >= 2

    # Left end: out[m], m in [0, P2).
    z_l = z_at(jnp.arange(nz))
    zi = jnp.arange(P2)[:, None] + j - P2
    zv = jnp.where((zi >= 0) & (zi < N1), z_l[jnp.clip(zi, 0, nz - 1)], 0.0)
    out = out.at[:P2].set((zv @ h2).astype(out.dtype))

    # Right end: out[m], m in [N2 - P2, N2).
    i0 = N1 - nz
    z_r = z_at(i0 + jnp.arange(nz))
    zi = (N2 - P2 + jnp.arange(P2))[:, None] + j - P2
    zv = jnp.where((zi >= 0) & (zi < N1), z_r[jnp.clip(zi - i0, 0, nz - 1)], 0.0)
    out = out.at[N2 - P2:N2].set((zv @ h2).astype(out.dtype))
    return out


def wiener_hammerstein_forward(x, h1, h2, poly_coeffs, *, chunk=1024, max_block_rows=512):
    """JAX wrapper: free reshape fold + halo slab + one pipelined pallas_call."""
    x = x.astype(jnp.float32)
    h1 = h1.astype(jnp.float32)
    h2 = h2.astype(jnp.float32)
    poly = poly_coeffs.astype(jnp.float32)

    N = x.shape[0]
    L1, L2 = h1.shape[0], h2.shape[0]
    P1, P2 = L1 // 2, L2 // 2
    # F.conv1d output lengths (stride=1, padding=L//2)
    N1 = N + 2 * P1 - L1 + 1             # after fir1
    N2 = N1 + 2 * P2 - L2 + 1            # after fir2
    H = (L1 - 1) + (L2 - 1)              # per-row halo
    Hh = max(H, 1)

    # Lane width: shrink for short signals so the grid has enough 8-row chunks.
    C = chunk
    assert C % 128 == 0
    while C > 128 and pl.cdiv(N2, C) < 16:
        C //= 2
    assert P1 + P2 < C and Hh <= C, "filters too long for the chosen chunk width"

    n_rows = pl.cdiv(N2, C)
    # >= 2 grid steps when possible (both v7x TensorCores), <= max_block_rows rows
    # per block (VMEM headroom), and block rows sized so tail padding is tiny.
    n_steps = max(2, pl.cdiv(n_rows, max_block_rows))
    r_blk = max(8, _round_up(pl.cdiv(n_rows, n_steps), 8))
    R = _round_up(n_rows, r_blk)
    n_steps = R // r_blk

    # Overlap-save layout without a gather: pad + free reshape.  Row r of x_main
    # holds x_ext[r*C : (r+1)*C] with x_ext[i] = x[i - (P1+P2)] (zero extended);
    # its halo (the next H samples) is simply the head of row r+1.
    left = P1 + P2
    xg = jnp.pad(x, (left, (R + 1) * C - left - N))
    xr = xg.reshape(R + 1, C)
    x_main = xr[:R]                      # (R, C)
    x_halo = xr[1:, :Hh]                 # (R, Hh)

    n_chunks = r_blk // 8
    unroll = 2 if n_chunks >= 2 else 1

    blk_bytes = 4 * r_blk * (2 * C + Hh)
    vmem_limit = int(min(48 << 20, max(16 << 20, 2 * blk_bytes + (4 << 20))))

    kernel = functools.partial(_wh_kernel, L1, L2, C, n_chunks, unroll)
    out2d = pl.pallas_call(
        kernel,
        out_shape=jax.ShapeDtypeStruct((R, C), jnp.float32),
        grid=(n_steps,),
        in_specs=[
            pl.BlockSpec(memory_space=pltpu.MemorySpace.SMEM),   # h1 taps
            pl.BlockSpec(memory_space=pltpu.MemorySpace.SMEM),   # h2 taps
            pl.BlockSpec(memory_space=pltpu.MemorySpace.SMEM),   # poly coeffs
            pl.BlockSpec((r_blk, C), lambda i: (i, 0)),          # main rows
            pl.BlockSpec((r_blk, Hh), lambda i: (i, 0)),         # halo slab
        ],
        out_specs=pl.BlockSpec((r_blk, C), lambda i: (i, 0)),
        compiler_params=pltpu.CompilerParams(
            dimension_semantics=("parallel",),
            vmem_limit_bytes=vmem_limit),
    )(h1, h2, poly, x_main, x_halo)

    # FIRfilter does .squeeze() -> 1-D signal out (padded tail rows are trimmed here).
    out = out2d.reshape(-1)[:N2]

    # Exact boundary fixup: only the first/last P2 samples have a FIR-2 window that
    # touches the zero-padded region of z; recompute those exactly instead of
    # masking every chunk inside the kernel.
    if P2 > 0:
        out = _fix_boundaries(out, x, h1, h2, poly, N, N1, N2, P1, P2, L1, L2)
    return out


if __name__ == "__main__":
    n_taps1, n_taps2 = 7, 5
    N = 2048

    key = jax.random.PRNGKey(0)
    kx, kh1, kh2, kp = jax.random.split(key, 4)
    x = jax.random.normal(kx, (N,), dtype=jnp.float32)

    # Pure-JAX reference with identical F.conv1d cross-correlation semantics.
    def ref_fir(sig, h):
        L = h.shape[0]
        P = L // 2
        sp = jnp.pad(sig, (P, P))
        No = sig.shape[0] + 2 * P - L + 1
        return sum(h[k] * sp[k:k + No] for k in range(L))

    def ref_forward(sig, h1, h2, poly):
        y1 = ref_fir(sig, h1)
        z = poly[0] + poly[1] * y1 + poly[2] * y1 ** 2 + poly[3] * y1 ** 3
        return ref_fir(z, h2)

    # Case 1: exactly the module's deterministic __init__ (delta FIRs, identity polynomial).
    h1 = jnp.zeros((n_taps1,), jnp.float32).at[n_taps1 // 2].set(1.0)
    h2 = jnp.zeros((n_taps2,), jnp.float32).at[n_taps2 // 2].set(1.0)
    poly = jnp.array([0.0, 1.0, 0.0, 0.0], jnp.float32)

    out = jax.block_until_ready(wiener_hammerstein_forward(x, h1, h2, poly))
    ref = ref_forward(x, h1, h2, poly)
    assert out.shape == ref.shape, (out.shape, ref.shape)
    assert jnp.allclose(out, ref, atol=1e-4, rtol=1e-4), float(jnp.max(jnp.abs(out - ref)))

    # Case 2: random ("trained") parameters to exercise both FIRs, the cubic and the boundaries.
    h1r = 0.25 * jax.random.normal(kh1, (n_taps1,), dtype=jnp.float32)
    h2r = 0.25 * jax.random.normal(kh2, (n_taps2,), dtype=jnp.float32)
    polyr = 0.3 * jax.random.normal(kp, (4,), dtype=jnp.float32)

    out2 = jax.block_until_ready(wiener_hammerstein_forward(x, h1r, h2r, polyr))
    ref2 = ref_forward(x, h1r, h2r, polyr)
    assert out2.shape == ref2.shape, (out2.shape, ref2.shape)
    assert jnp.allclose(out2, ref2, atol=1e-3, rtol=1e-3), float(jnp.max(jnp.abs(out2 - ref2)))

    print("KERNEL_OK")
</pallas_src>

<mosaic_0001>
module attributes {stable_mosaic.version = 11 : i64} {
  func.func @_wh_kernel(%arg0: i32, %arg1: memref<7xf32, #tpu.memory_space<smem>>, %arg2: memref<5xf32, #tpu.memory_space<smem>>, %arg3: memref<4xf32, #tpu.memory_space<smem>>, %arg4: memref<8x128xf32, #tpu.memory_space<vmem>>, %arg5: memref<8x10xf32, #tpu.memory_space<vmem>>, %arg6: memref<8x128xf32, #tpu.memory_space<vmem>>) attributes {dimension_semantics = [#tpu.dimension_semantics<parallel>], iteration_bounds = array<i64: 2>, scalar_prefetch = 0 : i64, scratch_operands = 0 : i64, tpu.core_type = #tpu.core_type<tc>, window_params = [{transform_indices = @transform_0, window_bounds = array<i64: 7>}, {transform_indices = @transform_1, window_bounds = array<i64: 5>}, {transform_indices = @transform_2, window_bounds = array<i64: 4>}, {transform_indices = @transform_3, window_bounds = array<i64: 8, 128>}, {transform_indices = @transform_4, window_bounds = array<i64: 8, 10>}, {transform_indices = @transform_5, window_bounds = array<i64: 8, 128>}]} {
    %c0 = arith.constant 0 : index
    %0 = memref.load %arg1[%c0] : memref<7xf32, #tpu.memory_space<smem>>
    %c1 = arith.constant 1 : index
    %1 = memref.load %arg1[%c1] : memref<7xf32, #tpu.memory_space<smem>>
    %c2 = arith.constant 2 : index
    %2 = memref.load %arg1[%c2] : memref<7xf32, #tpu.memory_space<smem>>
    %c3 = arith.constant 3 : index
    %3 = memref.load %arg1[%c3] : memref<7xf32, #tpu.memory_space<smem>>
    %c4 = arith.constant 4 : index
    %4 = memref.load %arg1[%c4] : memref<7xf32, #tpu.memory_space<smem>>
    %c5 = arith.constant 5 : index
    %5 = memref.load %arg1[%c5] : memref<7xf32, #tpu.memory_space<smem>>
    %c6 = arith.constant 6 : index
    %6 = memref.load %arg1[%c6] : memref<7xf32, #tpu.memory_space<smem>>
    %c0_0 = arith.constant 0 : index
    %7 = memref.load %arg2[%c0_0] : memref<5xf32, #tpu.memory_space<smem>>
    %c1_1 = arith.constant 1 : index
    %8 = memref.load %arg2[%c1_1] : memref<5xf32, #tpu.memory_space<smem>>
    %c2_2 = arith.constant 2 : index
    %9 = memref.load %arg2[%c2_2] : memref<5xf32, #tpu.memory_space<smem>>
    %c3_3 = arith.constant 3 : index
    %10 = memref.load %arg2[%c3_3] : memref<5xf32, #tpu.memory_space<smem>>
    %c4_4 = arith.constant 4 : index
    %11 = memref.load %arg2[%c4_4] : memref<5xf32, #tpu.memory_space<smem>>
    %c0_5 = arith.constant 0 : index
    %12 = memref.load %arg3[%c0_5] : memref<4xf32, #tpu.memory_space<smem>>
    %c1_6 = arith.constant 1 : index
    %13 = memref.load %arg3[%c1_6] : memref<4xf32, #tpu.memory_space<smem>>
    %c2_7 = arith.constant 2 : index
    %14 = memref.load %arg3[%c2_7] : memref<4xf32, #tpu.memory_space<smem>>
    %c3_8 = arith.constant 3 : index
    %15 = memref.load %arg3[%c3_8] : memref<4xf32, #tpu.memory_space<smem>>
    %c0_i32 = arith.constant 0 : i32
    %c8_i32 = arith.constant 8 : i32
    %16 = arith.muli %c0_i32, %c8_i32 : i32
    %17 = tpu.assume_multiple %16, 8 : i32
    %18 = arith.index_cast %17 : i32 to index
    %c0_9 = arith.constant 0 : index
    %19 = vector.load %arg4[%18, %c0_9] : memref<8x128xf32, #tpu.memory_space<vmem>>, vector<8x128xf32>
    %20 = arith.index_cast %17 : i32 to index
    %c0_10 = arith.constant 0 : index
    %21 = vector.load %arg5[%20, %c0_10] : memref<8x10xf32, #tpu.memory_space<vmem>>, vector<8x10xf32>
    %22 = tpu.concatenate %19, %21 in 1 : vector<8x128xf32>, vector<8x10xf32> -> vector<8x138xf32>
    %23 = vector.extract_strided_slice %22 {offsets = [0, 0], sizes = [8, 132], strides = [1, 1]} : vector<8x138xf32> to vector<8x132xf32>
    %24 = vector.broadcast %0 : f32 to vector<8x132xf32>
    %25 = arith.mulf %24, %23 : vector<8x132xf32>
    %26 = vector.extract_strided_slice %22 {offsets = [0, 1], sizes = [8, 132], strides = [1, 1]} : vector<8x138xf32> to vector<8x132xf32>
    %27 = vector.broadcast %1 : f32 to vector<8x132xf32>
    %28 = arith.mulf %27, %26 : vector<8x132xf32>
    %29 = arith.addf %25, %28 : vector<8x132xf32>
    %30 = vector.extract_strided_slice %22 {offsets = [0, 2], sizes = [8, 132], strides = [1, 1]} : vector<8x138xf32> to vector<8x132xf32>
    %31 = vector.broadcast %2 : f32 to vector<8x132xf32>
    %32 = arith.mulf %31, %30 : vector<8x132xf32>
    %33 = arith.addf %29, %32 : vector<8x132xf32>
    %34 = vector.extract_strided_slice %22 {offsets = [0, 3], sizes = [8, 132], strides = [1, 1]} : vector<8x138xf32> to vector<8x132xf32>
    %35 = vector.broadcast %3 : f32 to vector<8x132xf32>
    %36 = arith.mulf %35, %34 : vector<8x132xf32>
    %37 = arith.addf %33, %36 : vector<8x132xf32>
    %38 = vector.extract_strided_slice %22 {offsets = [0, 4], sizes = [8, 132], strides = [1, 1]} : vector<8x138xf32> to vector<8x132xf32>
    %39 = vector.broadcast %4 : f32 to vector<8x132xf32>
    %40 = arith.mulf %39, %38 : vector<8x132xf32>
    %41 = arith.addf %37, %40 : vector<8x132xf32>
    %42 = vector.extract_strided_slice %22 {offsets = [0, 5], sizes = [8, 132], strides = [1, 1]} : vector<8x138xf32> to vector<8x132xf32>
    %43 = vector.broadcast %5 : f32 to vector<8x132xf32>
    %44 = arith.mulf %43, %42 : vector<8x132xf32>
    %45 = arith.addf %41, %44 : vector<8x132xf32>
    %46 = vector.extract_strided_slice %22 {offsets = [0, 6], sizes = [8, 132], strides = [1, 1]} : vector<8x138xf32> to vector<8x132xf32>
    %47 = vector.broadcast %6 : f32 to vector<8x132xf32>
    %48 = arith.mulf %47, %46 : vector<8x132xf32>
    %49 = arith.addf %45, %48 : vector<8x132xf32>
    %50 = vector.broadcast %15 : f32 to vector<8x132xf32>
    %51 = arith.mulf %50, %49 : vector<8x132xf32>
    %52 = vector.broadcast %14 : f32 to vector<8x132xf32>
    %53 = arith.addf %51, %52 : vector<8x132xf32>
    %54 = arith.mulf %53, %49 : vector<8x132xf32>
    %55 = vector.broadcast %13 : f32 to vector<8x132xf32>
    %56 = arith.addf %54, %55 : vector<8x132xf32>
    %57 = arith.mulf %56, %49 : vector<8x132xf32>
    %58 = vector.broadcast %12 : f32 to vector<8x132xf32>
    %59 = arith.addf %57, %58 : vector<8x132xf32>
    %60 = vector.extract_strided_slice %59 {offsets = [0, 0], sizes = [8, 128], strides = [1, 1]} : vector<8x132xf32> to vector<8x128xf32>
    %61 = vector.broadcast %7 : f32 to vector<8x128xf32>
    %62 = arith.mulf %61, %60 : vector<8x128xf32>
    %63 = vector.extract_strided_slice %59 {offsets = [0, 1], sizes = [8, 128], strides = [1, 1]} : vector<8x132xf32> to vector<8x128xf32>
    %64 = vector.broadcast %8 : f32 to vector<8x128xf32>
    %65 = arith.mulf %64, %63 : vector<8x128xf32>
    %66 = arith.addf %62, %65 : vector<8x128xf32>
    %67 = vector.extract_strided_slice %59 {offsets = [0, 2], sizes = [8, 128], strides = [1, 1]} : vector<8x132xf32> to vector<8x128xf32>
    %68 = vector.broadcast %9 : f32 to vector<8x128xf32>
    %69 = arith.mulf %68, %67 : vector<8x128xf32>
    %70 = arith.addf %66, %69 : vector<8x128xf32>
    %71 = vector.extract_strided_slice %59 {offsets = [0, 3], sizes = [8, 128], strides = [1, 1]} : vector<8x132xf32> to vector<8x128xf32>
    %72 = vector.broadcast %10 : f32 to vector<8x128xf32>
    %73 = arith.mulf %72, %71 : vector<8x128xf32>
    %74 = arith.addf %70, %73 : vector<8x128xf32>
    %75 = vector.extract_strided_slice %59 {offsets = [0, 4], sizes = [8, 128], strides = [1, 1]} : vector<8x132xf32> to vector<8x128xf32>
    %76 = vector.broadcast %11 : f32 to vector<8x128xf32>
    %77 = arith.mulf %76, %75 : vector<8x128xf32>
    %78 = arith.addf %74, %77 : vector<8x128xf32>
    %79 = arith.index_cast %17 : i32 to index
    %c0_11 = arith.constant 0 : index
    %80 = vector.load %arg6[%79, %c0_11] : memref<8x128xf32, #tpu.memory_space<vmem>>, vector<8x128xf32>
    tpu.vector_store %arg6[%79, %c0_11], %78 {strides = array<i32>} : memref<8x128xf32, #tpu.memory_space<vmem>>, vector<8x128xf32>,
    %c1_i32 = arith.constant 1 : i32
    return
  }
  func.func @transform_0(%arg0: i32) -> i32 {
    %c0_i32 = arith.constant 0 : i32
    %c0_i32_0 = arith.constant 0 : i32
    return %c0_i32 : i32
  }
  func.func @transform_1(%arg0: i32) -> i32 {
    %c0_i32 = arith.constant 0 : i32
    %c0_i32_0 = arith.constant 0 : i32
    return %c0_i32 : i32
  }
  func.func @transform_2(%arg0: i32) -> i32 {
    %c0_i32 = arith.constant 0 : i32
    %c0_i32_0 = arith.constant 0 : i32
    return %c0_i32 : i32
  }
  func.func @transform_3(%arg0: i32) -> (i32, i32) {
    %c0_i32 = arith.constant 0 : i32
    %c0_i32_0 = arith.constant 0 : i32
    return %arg0, %c0_i32 : i32, i32
  }
  func.func @transform_4(%arg0: i32) -> (i32, i32) {
    %c0_i32 = arith.constant 0 : i32
    %c0_i32_0 = arith.constant 0 : i32
    return %arg0, %c0_i32 : i32, i32
  }
  func.func @transform_5(%arg0: i32) -> (i32, i32) {
    %c0_i32 = arith.constant 0 : i32
    %c0_i32_0 = arith.constant 0 : i32
    return %arg0, %c0_i32 : i32, i32
  }
}

</mosaic_0001>

<llo_original>
// kernel: tpu_custom_call.1
$region0: #{tpu_custom_call.1}
  #allocation0 [shape = 'u32[]', space=smem, size = 0x4, offset = 0x4, fixed_abs, tag = 'smem constant byte address 0x4 - core index']
  #allocation1 [shape = 'u32[72,128]{1,0:T(1,128)}', space=vmem, size = 0x9000, scoped, tag = 'internal scratch']
  %s0 = inlined_call_operand.hbm [shape: f32[7], index: 0, kind: input, shape index: {}]
  %s1 = inlined_call_operand.hbm [shape: f32[5], index: 1, kind: input, shape index: {}]
  %s2 = inlined_call_operand.vmem [shape: f32[4], index: 2, kind: input, shape index: {}]
  %s3 = inlined_call_operand.hbm [shape: f32[16,128], index: 3, kind: input, shape index: {}]
  %s4 = inlined_call_operand.hbm [shape: f32[16,10], index: 4, kind: input, shape index: {}]
  %s5 = inlined_call_operand.hbm [shape: f32[16,128], index: 5, kind: output, shape index: {}]
  %s6 = sld [smem:[#allocation0]]
  $region73: #{tpu_custom_call.1} parent=0
    _
  %s8 = ssub.s32 1, %s6
  %s9 = scalar_select 0, %s8, %s6
  $region1: #{tpu_custom_call.1} parent=0
    #allocation2 [shape = 'u8[512]{0}', space=smem, size = 0x200, scoped, tag = 'input window, operand 0, single buffered']
    #allocation3 [shape = 's32[2]{0}', space=sflag, size = 0x8, scoped, tag = 'scoped memory for tpu_custom_call.1']
    #allocation4 [shape = 's32[2]{0}', space=sflag, size = 0x8, scoped, tag = 'scoped memory for tpu_custom_call.1']
    #allocation5 [shape = 's32[2]{0}', space=sflag, size = 0x8, scoped, tag = 'scoped memory for tpu_custom_call.1']
    #allocation6 [shape = 's32[2]{0}', space=sflag, size = 0x8, scoped, tag = 'scoped memory for tpu_custom_call.1']
    #allocation7 [shape = 'u8[512]{0}', space=smem, size = 0x200, scoped, tag = 'input window, operand 1, single buffered']
    #allocation8 [shape = 's32[1]{0}', space=sflag, size = 0x4, scoped, tag = 'scoped memory for tpu_custom_call.1']
    #allocation9 [shape = 'u8[512]{0}', space=smem, size = 0x200, scoped, tag = 'input window, operand 2, single buffered']
    #allocation10 [shape = 'u8[8192]{0}', space=vmem, size = 0x2000, scoped, tag = 'input window, operand 3']
    #allocation11 [shape = 'u8[8192]{0}', space=vmem, size = 0x2000, scoped, tag = 'input window, operand 4']
    #allocation12 [shape = 's32[2]{0}', space=sflag, size = 0x8, scoped, tag = 'scoped memory for tpu_custom_call.1']
    #allocation13 [shape = 'u8[8192]{0}', space=vmem, size = 0x2000, scoped, tag = 'output window, operand 0']
    %10 = vsyncpa [#allocation5], 0
    %11 = vsyncpa [#allocation8], 0
    %12 = vsyncpa [#allocation6], 0
    %13 = vsyncpa [#allocation3], 0
    %s14 = scalar_lea.sflag [#allocation3], 1
    %15 = vsyncpa %s14, 0
    %16 = vsyncpa [#allocation12], 0
    %s17 = scalar_lea.sflag [#allocation12], 1
    %18 = vsyncpa %s17, 0
    %19 = vsyncpa [#allocation4], 0
    %s20 = scalar_lea.sflag [#allocation4], 1
    %21 = vsyncpa %s20, 0
    loop: start=0, step=1, limit=4
    $region2: #{tpu_custom_call.1} parent=1 // loop_pre_header
      _
    $region3: #{tpu_custom_call.1} parent=1 // loop_header
      %s23 = sphi 0, %s27
      %p24 = scmp.ge.s32.totalorder %s23, 4
      %s31 = sphi 0, %s31
      %s33 = sphi 0, %s31
      %s34 = sphi 0, %s33
      %s48 = sphi 0, %s34
      %s52 = sphi 0, %s52
      %s54 = sphi 0, %s52
      %s55 = sphi 0, %s54
      %s69 = sphi 0, %s55
      %s73 = sphi 0, %s73
      %s75 = sphi 0, %s73
      %s76 = sphi 0, %s75
      %s90 = sphi 0, %s76
      %s96 = sphi 0, %s98
      %s99 = sphi 0, %s96
      %s100 = sphi 0, %s99
      %s116 = sphi 0, %s100
      %s122 = sphi 0, %s124
      %s125 = sphi 0, %s122
      %s126 = sphi 0, %s125
      %s142 = sphi 0, %s126
      %s148 = sphi 0, %s150
      %s151 = sphi 0, %s148
      %s152 = sphi 0, %s151
      %s168 = sphi 0, %s152
    $region4: #{tpu_custom_call.1} parent=1 // loop_header_branch
      %26 = sbr.rel (%p24) target = $region8
    $region5: #{tpu_custom_call.1} parent=1 // loop_body
      %s28 = ssub.s32 %s23, 1
      %s29 = ssub.s32 %s23, 2
      %s30 = sadd.s32 %s23, 1
      %s32 = sadd.s32 %s31, 1
      %p35 = scmp.eq.s32.totalorder %s23, 1
      %p36 = scmp.ne.s32.totalorder %s31, %s33
      %p37 = scmp.eq.s32.totalorder %s23, 0
      %p38 = por %p36, %p37
      %p39 = scmp.ne.s32.totalorder %s31, %s33
      %p40 = scmp.eq.s32.totalorder %s28, 1
      %p41 = por %p39, %p40
      %p42 = scmp.ne.s32.totalorder %s33, %s34
      %p43 = scmp.eq.s32.totalorder %s28, 0
      %p44 = por %p42, %p43
      %p45 = scmp.ne.s32.totalorder %s33, %s34
      %p46 = scmp.eq.s32.totalorder %s29, 1
      %p47 = por %p45, %p46
      %p49 = scmp.ne.s32.totalorder %s34, %s48
      %p50 = scmp.eq.s32.totalorder %s29, 0
      %p51 = por %p49, %p50
      %s53 = sadd.s32 %s52, 1
      %p56 = scmp.eq.s32.totalorder %s23, 1
      %p57 = scmp.ne.s32.totalorder %s52, %s54
      %p58 = scmp.eq.s32.totalorder %s23, 0
      %p59 = por %p57, %p58
      %p60 = scmp.ne.s32.totalorder %s52, %s54
      %p61 = scmp.eq.s32.totalorder %s28, 1
      %p62 = por %p60, %p61
      %p63 = scmp.ne.s32.totalorder %s54, %s55
      %p64 = scmp.eq.s32.totalorder %s28, 0
      %p65 = por %p63, %p64
      %p66 = scmp.ne.s32.totalorder %s54, %s55
      %p67 = scmp.eq.s32.totalorder %s29, 1
      %p68 = por %p66, %p67
      %p70 = scmp.ne.s32.totalorder %s55, %s69
      %p71 = scmp.eq.s32.totalorder %s29, 0
      %p72 = por %p70, %p71
      %s74 = sadd.s32 %s73, 1
      %p77 = scmp.eq.s32.totalorder %s23, 1
      %p78 = scmp.ne.s32.totalorder %s73, %s75
      %p79 = scmp.eq.s32.totalorder %s23, 0
      %p80 = por %p78, %p79
      %p81 = scmp.ne.s32.totalorder %s73, %s75
      %p82 = scmp.eq.s32.totalorder %s28, 1
      %p83 = por %p81, %p82
      %p84 = scmp.ne.s32.totalorder %s75, %s76
      %p85 = scmp.eq.s32.totalorder %s28, 0
      %p86 = por %p84, %p85
      %p87 = scmp.ne.s32.totalorder %s75, %s76
      %p88 = scmp.eq.s32.totalorder %s29, 1
      %p89 = por %p87, %p88
      %p91 = scmp.ne.s32.totalorder %s76, %s90
      %p92 = scmp.eq.s32.totalorder %s29, 0
      %p93 = por %p91, %p92
      %s94 = ssub.s32 %s23, %s30
      %p95 = scmp.eq.s32.totalorder %s94, 0
      %s97 = sadd.s32 %s96, 1
      %s98 = scalar_select %p95, %s96, %s97
      %p101 = pneg %p95
      %p102 = scmp.eq.s32.totalorder %s23, 1
      %p103 = por %p101, %p102
      %p104 = scmp.ne.s32.totalorder %s96, %s99
      %p105 = scmp.eq.s32.totalorder %s23, 0
      %p106 = por %p104, %p105
      %p107 = scmp.ne.s32.totalorder %s96, %s99
      %p108 = scmp.eq.s32.totalorder %s28, 1
      %p109 = por %p107, %p108
      %p110 = scmp.ne.s32.totalorder %s99, %s100
      %p111 = scmp.eq.s32.totalorder %s28, 0
      %p112 = por %p110, %p111
      %p113 = scmp.ne.s32.totalorder %s99, %s100
      %p114 = scmp.eq.s32.totalorder %s29, 1
      %p115 = por %p113, %p114
      %p117 = scmp.ne.s32.totalorder %s100, %s116
      %p118 = scmp.eq.s32.totalorder %s29, 0
      %p119 = por %p117, %p118
      %s120 = ssub.s32 %s23, %s30
      %p121 = scmp.eq.s32.totalorder %s120, 0
      %s123 = sadd.s32 %s122, 1
      %s124 = scalar_select %p121, %s122, %s123
      %p127 = pneg %p121
      %p128 = scmp.eq.s32.totalorder %s23, 1
      %p129 = por %p127, %p128
      %p130 = scmp.ne.s32.totalorder %s122, %s125
      %p131 = scmp.eq.s32.totalorder %s23, 0
      %p132 = por %p130, %p131
      %p133 = scmp.ne.s32.totalorder %s122, %s125
      %p134 = scmp.eq.s32.totalorder %s28, 1
      %p135 = por %p133, %p134
      %p136 = scmp.ne.s32.totalorder %s125, %s126
      %p137 = scmp.eq.s32.totalorder %s28, 0
      %p138 = por %p136, %p137
      %p139 = scmp.ne.s32.totalorder %s125, %s126
      %p140 = scmp.eq.s32.totalorder %s29, 1
      %p141 = por %p139, %p140
      %p143 = scmp.ne.s32.totalorder %s126, %s142
      %p144 = scmp.eq.s32.totalorder %s29, 0
      %p145 = por %p143, %p144
      %s146 = ssub.s32 %s23, %s30
      %p147 = scmp.eq.s32.totalorder %s146, 0
      %s149 = sadd.s32 %s148, 1
      %s150 = scalar_select %p147, %s148, %s149
      %p153 = pneg %p147
      %p154 = scmp.eq.s32.totalorder %s23, 1
      %p155 = por %p153, %p154
      %p156 = scmp.ne.s32.totalorder %s148, %s151
      %p157 = scmp.eq.s32.totalorder %s23, 0
      %p158 = por %p156, %p157
      %p159 = scmp.ne.s32.totalorder %s148, %s151
      %p160 = scmp.eq.s32.totalorder %s28, 1
      %p161 = por %p159, %p160
      %p162 = scmp.ne.s32.totalorder %s151, %s152
      %p163 = scmp.eq.s32.totalorder %s28, 0
      %p164 = por %p162, %p163
      %p165 = scmp.ne.s32.totalorder %s151, %s152
      %p166 = scmp.eq.s32.totalorder %s29, 1
      %p167 = por %p165, %p166
      %p169 = scmp.ne.s32.totalorder %s152, %s168
      %p170 = scmp.eq.s32.totalorder %s29, 0
      %p171 = por %p169, %p170
      %p172 = scmp.le.s32.totalorder 1, %s23
      %p173 = scmp.lt.s32.totalorder %s23, 3
      %p174 = pnand %p172, %p173
      %p175 = pneg %p174
      // Predicated region
      $region9: #{tpu_custom_call.1} parent=5 // pred_check
        _
      $region10: #{tpu_custom_call.1} parent=5 // pred_check_branch
        %177 = sbr.rel (%p174) target = $region12
      $region11: #{tpu_custom_call.1} parent=5 // pred_region
        %s178 = ssub.s32 %s23, 1
        // Predicated region
        $region13: #{tpu_custom_call.1} parent=11 // pred_check
          %p179 = pneg %p44
        $region14: #{tpu_custom_call.1} parent=11 // pred_check_branch
          %181 = sbr.rel (%p179) target = $region16
        $region15: #{tpu_custom_call.1} parent=11 // pred_region
          %183 = vsyncadd [#allocation5], 0
          %s185 = sshll.u32 %s0, 4
          %s186 = int_to_ptr.hbm [resolvable:$true] %s185
          %188 = dma.hbm_to_smem %s186, 16, [#allocation2], [#allocation5]
        $region16: #{tpu_custom_call.1} parent=11 // pred_fallthru
          _
        // Predicated region
        $region17: #{tpu_custom_call.1} parent=11 // pred_check
          %p189 = pneg %p65
        $region18: #{tpu_custom_call.1} parent=11 // pred_check_branch
          %191 = sbr.rel (%p189) target = $region20
        $region19: #{tpu_custom_call.1} parent=11 // pred_region
          %193 = vsyncadd [#allocation8], 0
          %s195 = sshll.u32 %s1, 4
          %s196 = int_to_ptr.hbm [resolvable:$true] %s195
          %198 = dma.hbm_to_smem %s196, 16, [#allocation7], [#allocation8]
        $region20: #{tpu_custom_call.1} parent=11 // pred_fallthru
          _
        // Predicated region
        $region21: #{tpu_custom_call.1} parent=11 // pred_check
          %p199 = pneg %p86
        $region22: #{tpu_custom_call.1} parent=11 // pred_check_branch
          %201 = sbr.rel (%p199) target = $region24
        $region23: #{tpu_custom_call.1} parent=11 // pred_region
          %203 = vsyncadd [#allocation6], 0
          %s205 = sshll.u32 %s2, 4
          %s206 = int_to_ptr.vmem [resolvable:$true] %s205
          %208 = dma.vmem_to_smem %s206, 16, [#allocation9], [#allocation6]
        $region24: #{tpu_custom_call.1} parent=11 // pred_fallthru
          _
      $region12: #{tpu_custom_call.1} parent=5 // pred_fallthru
        _
      %p209 = scmp.lt.s32.totalorder %s23, 2
      // Predicated region
      $region25: #{tpu_custom_call.1} parent=5 // pred_check
        %p210 = pneg %p209
      $region26: #{tpu_custom_call.1} parent=5 // pred_check_branch
        %212 = sbr.rel (%p210) target = $region28
      $region27: #{tpu_custom_call.1} parent=5 // pred_region
        // Predicated region
        $region29: #{tpu_custom_call.1} parent=27 // pred_check
          %p213 = pneg %p106
        $region30: #{tpu_custom_call.1} parent=27 // pred_check_branch
          %215 = sbr.rel (%p213) target = $region32
        $region31: #{tpu_custom_call.1} parent=27 // pred_region
          %s216 = sand.u32 %s96, 1
          %s217 = scalar_lea.sflag [#allocation3], %s216
          %s218 = sand.u32 %s96, 1
          %s219 = smul.addr %s218, 8
          %s220 = scalar_lea.vmem [#allocation10], %s219
          %222 = vsyncadd %s217, 0
          %s223 = smul.addr %s23, 8
          %s224 = scalar_lea.hbm %s3, %s223
          %s226 = sshll.u32 %s224, 4
          %s227 = int_to_ptr.hbm [resolvable:$true] %s226
          %s228 = sshll.u32 %s220, 4
          %s229 = int_to_ptr.vmem [resolvable:$true] %s228
          %231 = dma.hbm_to_vmem [thread:$0]  %s227, 128, %s229, %s217
        $region32: #{tpu_custom_call.1} parent=27 // pred_fallthru
          _
        // Predicated region
        $region33: #{tpu_custom_call.1} parent=27 // pred_check
          %p232 = pneg %p132
        $region34: #{tpu_custom_call.1} parent=27 // pred_check_branch
          %234 = sbr.rel (%p232) target = $region36
        $region35: #{tpu_custom_call.1} parent=27 // pred_region
          %s235 = sand.u32 %s122, 1
          %s236 = scalar_lea.sflag [#allocation12], %s235
          %s237 = sand.u32 %s122, 1
          %s238 = smul.addr %s237, 8
          %s239 = scalar_lea.vmem [#allocation11], %s238
          %241 = vsyncadd %s236, 0
          %s242 = smul.addr %s23, 8
          %s243 = scalar_lea.hbm %s4, %s242
          %s245 = sshll.u32 %s243, 4
          %s246 = int_to_ptr.hbm [resolvable:$true] %s245
          %s247 = sshll.u32 %s239, 4
          %s248 = int_to_ptr.vmem [resolvable:$true] %s247
          %250 = dma.hbm_to_vmem [thread:$0]  %s246, 128, %s248, %s236
        $region36: #{tpu_custom_call.1} parent=27 // pred_fallthru
          _
      $region28: #{tpu_custom_call.1} parent=5 // pred_fallthru
        _
      %p251 = scmp.le.s32.totalorder 1, %s23
      %p252 = scmp.lt.s32.totalorder %s23, 3
      %p253 = pnand %p251, %p252
      %p254 = pneg %p253
      // Predicated region
      $region37: #{tpu_custom_call.1} parent=5 // pred_check
        _
      $region38: #{tpu_custom_call.1} parent=5 // pred_check_branch
        %256 = sbr.rel (%p253) target = $region40
      $region39: #{tpu_custom_call.1} parent=5 // pred_region
        %s257 = ssub.s32 %s23, 1
        // Predicated region
        $region41: #{tpu_custom_call.1} parent=39 // pred_check
          %p258 = pneg %p44
        $region42: #{tpu_custom_call.1} parent=39 // pred_check_branch
          %260 = sbr.rel (%p258) target = $region44
        $region43: #{tpu_custom_call.1} parent=39 // pred_region
          %262 = dma.done [#allocation5], 16
        $region44: #{tpu_custom_call.1} parent=39 // pred_fallthru
          _
        // Predicated region
        $region45: #{tpu_custom_call.1} parent=39 // pred_check
          %p263 = pneg %p65
        $region46: #{tpu_custom_call.1} parent=39 // pred_check_branch
          %265 = sbr.rel (%p263) target = $region48
        $region47: #{tpu_custom_call.1} parent=39 // pred_region
          %267 = dma.done [#allocation8], 16
        $region48: #{tpu_custom_call.1} parent=39 // pred_fallthru
          _
        // Predicated region
        $region49: #{tpu_custom_call.1} parent=39 // pred_check
          %p268 = pneg %p86
        $region50: #{tpu_custom_call.1} parent=39 // pred_check_branch
          %270 = sbr.rel (%p268) target = $region52
        $region51: #{tpu_custom_call.1} parent=39 // pred_region
          %272 = dma.done [#allocation6], 16
        $region52: #{tpu_custom_call.1} parent=39 // pred_fallthru
          _
        %s273 = sand.u32 %s99, 1
        %s274 = scalar_lea.sflag [#allocation3], %s273
        %s275 = sand.u32 %s99, 1
        %s276 = smul.addr %s275, 8
        %s277 = scalar_lea.vmem [#allocation10], %s276
        // Predicated region
        $region53: #{tpu_custom_call.1} parent=39 // pred_check
          %p278 = pneg %p112
        $region54: #{tpu_custom_call.1} parent=39 // pred_check_branch
          %280 = sbr.rel (%p278) target = $region56
        $region55: #{tpu_custom_call.1} parent=39 // pred_region
          %282 = dma.done %s274, 128
        $region56: #{tpu_custom_call.1} parent=39 // pred_fallthru
          _
        %s283 = sand.u32 %s125, 1
        %s284 = scalar_lea.sflag [#allocation12], %s283
        %s285 = sand.u32 %s125, 1
        %s286 = smul.addr %s285, 8
        %s287 = scalar_lea.vmem [#allocation11], %s286
        // Predicated region
        $region57: #{tpu_custom_call.1} parent=39 // pred_check
          %p288 = pneg %p138
        $region58: #{tpu_custom_call.1} parent=39 // pred_check_branch
          %290 = sbr.rel (%p288) target = $region60
        $region59: #{tpu_custom_call.1} parent=39 // pred_region
          %292 = dma.done %s284, 128
        $region60: #{tpu_custom_call.1} parent=39 // pred_fallthru
          _
        %293 = sfence
        %p294 = pneg %p44
        %p295 = pneg %p41
        %p296 = pneg %p65
        %p297 = pneg %p62
        %p298 = pneg %p86
        %p299 = pneg %p83
        %s300 = sand.u32 %s99, 1
        %s301 = scalar_lea.sflag [#allocation3], %s300
        %s302 = sand.u32 %s99, 1
        %s303 = smul.addr %s302, 8
        %s304 = scalar_lea.vmem [#allocation10], %s303
        %p305 = pneg %p112
        %p306 = pneg %p109
        %s307 = sand.u32 %s125, 1
        %s308 = scalar_lea.sflag [#allocation12], %s307
        %s309 = sand.u32 %s125, 1
        %s310 = smul.addr %s309, 8
        %s311 = scalar_lea.vmem [#allocation11], %s310
        %p312 = pneg %p138
        %p313 = pneg %p135
        %p314 = pneg %p164
        %p315 = pneg %p161
        %s316 = sand.u32 %s151, 1
        %s317 = scalar_lea.sflag [#allocation4], %s316
        %s318 = sand.u32 %s151, 1
        %s319 = smul.addr %s318, 8
        %s320 = scalar_lea.vmem [#allocation13], %s319
        %s321 = sld [smem:[#allocation2]]
        %s322 = sld [smem:[#allocation2 + $0x1]]
        %s323 = sld [smem:[#allocation2 + $0x2]]
        %s324 = sld [smem:[#allocation2 + $0x3]]
        %s325 = sld [smem:[#allocation2 + $0x4]]
        %s326 = sld [smem:[#allocation2 + $0x5]]
        %s327 = sld [smem:[#allocation2 + $0x6]]
        %s328 = sld [smem:[#allocation7]]
        %s329 = sld [smem:[#allocation7 + $0x1]]
        %s330 = sld [smem:[#allocation7 + $0x2]]
        %s331 = sld [smem:[#allocation7 + $0x3]]
        %s332 = sld [smem:[#allocation7 + $0x4]]
        %s333 = sld [smem:[#allocation9]]
        %s334 = sld [smem:[#allocation9 + $0x1]]
        %s335 = sld [smem:[#allocation9 + $0x2]]
        %s336 = sld [smem:[#allocation9 + $0x3]]
        %v337 = vld [vmem:[%s277] sm:$0xff]
        %v338 = vld [vmem:[%s287] sm:$0xff]
        %v339 = vstv %s321
        %v340 = vmul.f32 %v339, %v337
        %v341 = vmul.f32 %v339, %v338
        %v342 = vstv %s322
        %v343 = vmul.f32 %v342, %v337
        %v344 = vmul.f32 %v342, %v338
        %347 = vrot.lane.b32.xlu0 %v343, 127
        %v348 = vpop.permute.xlu0 %347
        %349 = vrot.lane.b32.xlu0 %v344, 127
        %v350 = vpop.permute.xlu0 %349
        %vm351 = vcmask 1039360
        %v352 = vsel %vm351, %v348, %v350
        %v355 = vadd.f32 %v340, %v352
        %v356 = vadd.f32 %v341, %v350
        %v357 = vstv %s323
        %v358 = vmul.f32 %v357, %v337
        %v359 = vmul.f32 %v357, %v338
        %362 = vrot.lane.b32.xlu0 %v358, 126
        %v363 = vpop.permute.xlu0 %362
        %364 = vrot.lane.b32.xlu0 %v359, 126
        %v365 = vpop.permute.xlu0 %364
        %vm366 = vcmask 1031168
        %v367 = vsel %vm366, %v363, %v365
        %v370 = vadd.f32 %v355, %v367
        %v371 = vadd.f32 %v356, %v365
        %v372 = vstv %s324
        %v373 = vmul.f32 %v372, %v337
        %v374 = vmul.f32 %v372, %v338
        %377 = vrot.lane.b32.xlu0 %v373, 125
        %v378 = vpop.permute.xlu0 %377
        %379 = vrot.lane.b32.xlu0 %v374, 125
        %v380 = vpop.permute.xlu0 %379
        %vm381 = vcmask 1022976
        %v382 = vsel %vm381, %v378, %v380
        %v385 = vadd.f32 %v370, %v382
        %v386 = vadd.f32 %v371, %v380
        %v387 = vstv %s325
        %v388 = vmul.f32 %v387, %v337
        %v389 = vmul.f32 %v387, %v338
        %392 = vrot.lane.b32.xlu0 %v388, 124
        %v393 = vpop.permute.xlu0 %392
        %394 = vrot.lane.b32.xlu0 %v389, 124
        %v395 = vpop.permute.xlu0 %394
        %vm396 = vcmask 1014784
        %v397 = vsel %vm396, %v393, %v395
        %v400 = vadd.f32 %v385, %v397
        %v401 = vadd.f32 %v386, %v395
        %v402 = vstv %s326
        %v403 = vmul.f32 %v402, %v337
        %v404 = vmul.f32 %v402, %v338
        %407 = vrot.lane.b32.xlu0 %v403, 123
        %v408 = vpop.permute.xlu0 %407
        %409 = vrot.lane.b32.xlu0 %v404, 123
        %v410 = vpop.permute.xlu0 %409
        %vm411 = vcmask 1006592
        %v412 = vsel %vm411, %v408, %v410
        %v415 = vadd.f32 %v400, %v412
        %v416 = vadd.f32 %v401, %v410
        %v417 = vstv %s327
        %v418 = vmul.f32 %v417, %v337
        %v419 = vmul.f32 %v417, %v338
        %422 = vrot.lane.b32.xlu0 %v418, 122
        %v423 = vpop.permute.xlu0 %422
        %424 = vrot.lane.b32.xlu0 %v419, 122
        %v425 = vpop.permute.xlu0 %424
        %vm426 = vcmask 998400
        %v427 = vsel %vm426, %v423, %v425
        %v430 = vadd.f32 %v415, %v427
        %v431 = vadd.f32 %v416, %v425
        %v432 = vstv %s336
        %v433 = vmul.f32 %v432, %v430
        %v434 = vmul.f32 %v432, %v431
        %v435 = vstv %s335
        %v436 = vadd.f32 %v433, %v435
        %v437 = vadd.f32 %v434, %v435
        %v438 = vmul.f32 %v436, %v430
        %v439 = vmul.f32 %v437, %v431
        %v440 = vstv %s334
        %v441 = vadd.f32 %v438, %v440
        %v442 = vadd.f32 %v439, %v440
        %v443 = vmul.f32 %v441, %v430
        %v444 = vmul.f32 %v442, %v431
        %v445 = vstv %s333
        %v446 = vadd.f32 %v443, %v445
        %v447 = vadd.f32 %v444, %v445
        %v448 = vstv %s328
        %v449 = vmul.f32 %v448, %v446
        %v450 = vstv %s329
        %v451 = vmul.f32 %v450, %v446
        %v452 = vmul.f32 %v450, %v447
        %455 = vrot.lane.b32.xlu0 %v451, 127
        %v456 = vpop.permute.xlu0 %455
        %457 = vrot.lane.b32.xlu0 %v452, 127
        %v458 = vpop.permute.xlu0 %457
        %v459 = vsel %vm351, %v456, %v458
        %v461 = vadd.f32 %v449, %v459
        %v462 = vstv %s330
        %v463 = vmul.f32 %v462, %v446
        %v464 = vmul.f32 %v462, %v447
        %467 = vrot.lane.b32.xlu0 %v463, 126
        %v468 = vpop.permute.xlu0 %467
        %469 = vrot.lane.b32.xlu0 %v464, 126
        %v470 = vpop.permute.xlu0 %469
        %v471 = vsel %vm366, %v468, %v470
        %v473 = vadd.f32 %v461, %v471
        %v474 = vstv %s331
        %v475 = vmul.f32 %v474, %v446
        %v476 = vmul.f32 %v474, %v447
        %479 = vrot.lane.b32.xlu0 %v475, 125
        %v480 = vpop.permute.xlu0 %479
        %481 = vrot.lane.b32.xlu0 %v476, 125
        %v482 = vpop.permute.xlu0 %481
        %v483 = vsel %vm381, %v480, %v482
        %v485 = vadd.f32 %v473, %v483
        %v486 = vstv %s332
        %v487 = vmul.f32 %v486, %v446
        %v488 = vmul.f32 %v486, %v447
        %491 = vrot.lane.b32.xlu0 %v487, 124
        %v492 = vpop.permute.xlu0 %491
        %493 = vrot.lane.b32.xlu0 %v488, 124
        %v494 = vpop.permute.xlu0 %493
        %v495 = vsel %vm396, %v492, %v494
        %v497 = vadd.f32 %v485, %v495
        %498 = vst [vmem:[%s320] sm:$0xff] %v497
        %s499 = sand.u32 %s151, 1
        %s500 = scalar_lea.sflag [#allocation4], %s499
        %s501 = sand.u32 %s151, 1
        %s502 = smul.addr %s501, 8
        %s503 = scalar_lea.vmem [#allocation13], %s502
        // Predicated region
        $region61: #{tpu_custom_call.1} parent=39 // pred_check
          %p504 = pneg %p161
        $region62: #{tpu_custom_call.1} parent=39 // pred_check_branch
          %506 = sbr.rel (%p504) target = $region64
        $region63: #{tpu_custom_call.1} parent=39 // pred_region
          %508 = vsyncadd %s500, 0
          %s509 = smul.addr %s28, 8
          %s510 = scalar_lea.hbm %s5, %s509
          %s512 = sshll.u32 %s503, 4
          %s513 = int_to_ptr.vmem [resolvable:$true] %s512
          %s514 = sshll.u32 %s510, 4
          %s515 = int_to_ptr.hbm [resolvable:$true] %s514
          %517 = dma.vmem_to_hbm [thread:$0]  %s513, 128, %s515, %s500
        $region64: #{tpu_custom_call.1} parent=39 // pred_fallthru
          _
      $region40: #{tpu_custom_call.1} parent=5 // pred_fallthru
        _
      %p518 = scmp.le.s32.totalorder 2, %s23
      // Predicated region
      $region65: #{tpu_custom_call.1} parent=5 // pred_check
        %p519 = pneg %p518
      $region66: #{tpu_custom_call.1} parent=5 // pred_check_branch
        %521 = sbr.rel (%p519) target = $region68
      $region67: #{tpu_custom_call.1} parent=5 // pred_region
        %s522 = ssub.s32 %s23, 2
        // Predicated region
        $region69: #{tpu_custom_call.1} parent=67 // pred_check
          %p523 = pneg %p167
        $region70: #{tpu_custom_call.1} parent=67 // pred_check_branch
          %525 = sbr.rel (%p523) target = $region72
        $region71: #{tpu_custom_call.1} parent=67 // pred_region
          %s526 = sand.u32 %s152, 1
          %s527 = scalar_lea.sflag [#allocation4], %s526
          %s528 = sand.u32 %s152, 1
          %s529 = smul.addr %s528, 8
          %s530 = scalar_lea.vmem [#allocation13], %s529
          %532 = dma.done %s527, 128
        $region72: #{tpu_custom_call.1} parent=67 // pred_fallthru
          _
      $region68: #{tpu_custom_call.1} parent=5 // pred_fallthru
        _
    $region6: #{tpu_custom_call.1} parent=1 // loop_footer
      %s27 = sadd.s32 1, %s23
    $region7: #{tpu_custom_call.1} parent=1 // loop_footer_branch
      %22 = sbr.rel target = $region3
    $region8: #{tpu_custom_call.1} parent=1 // loop_exit
      _
    %533 = vsyncpa [#allocation3], 1
    %s534 = scalar_lea.sflag [#allocation3], 1
    %535 = vsyncpa %s534, 1
    %536 = vsyncpa [#allocation12], 1
    %s537 = scalar_lea.sflag [#allocation12], 1
    %538 = vsyncpa %s537, 1
    %539 = vsyncpa [#allocation4], 1
    %s540 = scalar_lea.sflag [#allocation4], 1
    %541 = vsyncpa %s540, 1
    %542 = vsyncpa [#allocation5], 1
    %s543 = scalar_lea.sflag [#allocation5], 1
    %544 = vsyncpa %s543, 1
    %545 = vsyncpa [#allocation8], 1
    %546 = vsyncpa [#allocation6], 1
    %s547 = scalar_lea.sflag [#allocation6], 1
    %548 = vsyncpa %s547, 1

</llo_original>
